<compile_context>
chip_gen: v7x
topology: tpu7x:2x2x1
jax: 0.10.0
libtpu: 0.0.40
codegen_flags: <defaults>
</compile_context>

<pallas_src>
import functools

import jax
import jax.numpy as jnp
from jax.experimental import pallas as pl
from jax.experimental.pallas import tpu as pltpu


def _round_up(x, m):
    return ((x + m - 1) // m) * m


def _centerloss_single_kernel(coord_ref, labels_ref, center_ref, out_ref, *,
                              batch_size):
    """Single-tile fast path: whole (padded) batch in one VMEM tile."""
    coord = coord_ref[...]           # (F, TB)  f32, batch on the lane axis
    labels = labels_ref[...]         # (1, TB)  i32 (padded entries are -1)
    center = center_ref[...]         # (F, C)   f32 (center^T)

    C = center.shape[1]
    TB = coord.shape[1]

    class_ids = jax.lax.broadcasted_iota(jnp.int32, (C, TB), 0)
    onehot = (labels == class_ids).astype(jnp.float32)           # (C, TB)

    # Gather centers via MXU, lane-dense: (F, C) @ (C, TB) -> (F, TB)
    centers_g = jnp.dot(center, onehot, preferred_element_type=jnp.float32)
    diff = coord - centers_g
    dist = jnp.sqrt(jnp.sum(diff * diff, axis=0, keepdims=True))  # (1, TB)

    count = jnp.sum(onehot, axis=1, keepdims=True)                # (C, 1)
    distsum = jnp.sum(onehot * dist, axis=1, keepdims=True)       # (C, 1)

    present = count > 0.0
    # Fold /count and /B into one reciprocal-multiply (exact path so the
    # 1e-5 tolerance holds).
    denom = jnp.where(present, count * jnp.float32(batch_size), 1.0)
    inv = pl.reciprocal(denom)
    out_ref[0, 0] = jnp.sum(jnp.where(present, distsum * inv, 0.0))


def _centerloss_tiled_kernel(coord_ref, labels_ref, center_ref,
                             count_out_ref, distsum_out_ref,
                             count_acc, distsum_acc):
    """Streaming path: grid = (num_cores, num_batch_tiles_per_core)."""
    i = pl.program_id(1)
    last = pl.num_programs(1) - 1

    coord = coord_ref[...]           # (F, TB)
    labels = labels_ref[...]         # (1, TB)
    center = center_ref[...]         # (F, C), VMEM-resident

    C = center.shape[1]
    TB = coord.shape[1]

    class_ids = jax.lax.broadcasted_iota(jnp.int32, (C, TB), 0)
    onehot = (labels == class_ids).astype(jnp.float32)            # (C, TB)

    centers_g = jnp.dot(center, onehot, preferred_element_type=jnp.float32)
    diff = coord - centers_g
    dist = jnp.sqrt(jnp.sum(diff * diff, axis=0, keepdims=True))  # (1, TB)

    @pl.when(i == 0)
    def _():
        count_acc[...] = jnp.zeros_like(count_acc)
        distsum_acc[...] = jnp.zeros_like(distsum_acc)

    # Lane-wide accumulation: pure VPU adds, no per-step XLU reductions.
    count_acc[...] += onehot
    distsum_acc[...] += onehot * dist

    @pl.when(i == last)
    def _():
        # Cross-lane reductions only in the epilogue (twice per core).
        count_out_ref[...] = jnp.sum(
            count_acc[...], axis=1, keepdims=True).reshape(1, C, 1)
        distsum_out_ref[...] = jnp.sum(
            distsum_acc[...], axis=1, keepdims=True).reshape(1, C, 1)


def _centerloss_impl(coordinate, labels, center):
    """coordinate: (B, F) f32, labels: (B,) int, center: (C, F) f32 -> scalar f32."""
    B, F = coordinate.shape
    C, Fc = center.shape
    assert F == Fc
    # NB: the PyTorch module hardcodes a 10-bin histc (MNIST); with class_num=10
    # the onehot-count below is equivalent.

    LANE = 128
    # Tile width from a byte budget (~1 MiB coord tile), clamped to [256, 2048]
    # lanes.  Double-buffered coord tiles + (C, TB) scratch stay well under the
    # scoped-VMEM defaults on v5e (16 MiB) / v6e / v7x (32 MiB), so no explicit
    # vmem_limit_bytes is needed.
    budget = ((1 << 20) // (F * 4)) // LANE * LANE
    TB = max(256, min(2048, max(LANE, budget)))

    # TODO(synk): if F is already a multiple of 128, the transpose could be
    # skipped entirely by tiling (TB, F) blocks with the feature reduce on lanes.
    coord_t = coordinate.astype(jnp.float32).T          # (F, B)
    labels_r = labels.astype(jnp.int32).reshape(1, B)   # (1, B)
    center_t = center.astype(jnp.float32).T             # (F, C)

    B_single = _round_up(B, LANE)
    if B_single <= TB:
        # ---- single-tile fast path: no grid carry, no scratch, no branches ----
        pad = B_single - B
        coord_p = jnp.pad(coord_t, ((0, 0), (0, pad)))
        labels_p = jnp.pad(labels_r, ((0, 0), (0, pad)), constant_values=-1)

        out = pl.pallas_call(
            functools.partial(_centerloss_single_kernel, batch_size=B),
            out_shape=jax.ShapeDtypeStruct((1, 1), jnp.float32),
            grid_spec=pltpu.PrefetchScalarGridSpec(
                num_scalar_prefetch=0,
                grid=(1,),
                in_specs=[
                    pl.BlockSpec((F, B_single), lambda i: (0, 0)),
                    pl.BlockSpec((1, B_single), lambda i: (0, 0)),
                    pl.BlockSpec((F, C), lambda i: (0, 0)),
                ],
                # Scalar result -> SMEM: no padded VMEM tile / masked stores.
                out_specs=pl.BlockSpec(memory_space=pltpu.MemorySpace.SMEM),
            ),
        )(coord_p, labels_p, center_t)
        return out[0, 0]

    # ---- streaming path, batch sharded across the 2 v7x TensorCores ----
    NC = 2                                   # leading "parallel" grid axis
    B_pad = _round_up(B, NC * TB)
    nb2 = B_pad // (NC * TB)                 # batch tiles per core
    pad = B_pad - B

    coord_p = jnp.pad(coord_t, ((0, 0), (0, pad)))
    labels_p = jnp.pad(labels_r, ((0, 0), (0, pad)), constant_values=-1)

    counts, dists = pl.pallas_call(
        _centerloss_tiled_kernel,
        out_shape=(
            jax.ShapeDtypeStruct((NC, C, 1), jnp.float32),
            jax.ShapeDtypeStruct((NC, C, 1), jnp.float32),
        ),
        grid_spec=pltpu.PrefetchScalarGridSpec(
            num_scalar_prefetch=0,
            grid=(NC, nb2),
            in_specs=[
                pl.BlockSpec((F, TB), lambda p, i: (0, p * nb2 + i)),
                pl.BlockSpec((1, TB), lambda p, i: (0, p * nb2 + i)),
                pl.BlockSpec((F, C), lambda p, i: (0, 0)),
            ],
            out_specs=[
                pl.BlockSpec((1, C, 1), lambda p, i: (p, 0, 0)),
                pl.BlockSpec((1, C, 1), lambda p, i: (p, 0, 0)),
            ],
            scratch_shapes=[
                pltpu.VMEM((C, TB), jnp.float32),   # per-class counts (lane-wide)
                pltpu.VMEM((C, TB), jnp.float32),   # per-class dist sums
            ],
        ),
        # Outer axis: independent per-core partials -> "parallel" (megacore on
        # v7x, harmless sequential loop on v5e/v6e).  Inner axis carries the
        # scalar accumulators -> "arbitrary".
        compiler_params=pltpu.CompilerParams(
            dimension_semantics=("parallel", "arbitrary")),
    )(coord_p, labels_p, center_t)

    # Tiny finalize (combines the two per-core partials) stays in the jitted
    # wrapper so the kernel never needs global counts.
    count = jnp.sum(counts, axis=0).reshape(C)
    distsum = jnp.sum(dists, axis=0).reshape(C)
    present = count > 0.0
    denom = jnp.where(present, count * jnp.float32(B), 1.0)
    return jnp.sum(jnp.where(present, distsum / denom, 0.0))


# jit so transpose + pad + pallas_call (+ finalize) dispatch as one program.
centerloss = jax.jit(_centerloss_impl)


def centerloss_ref(coordinate, labels, center):
    """Pure-JAX reference with identical semantics to the PyTorch module."""
    onehot = (labels[:, None] == jnp.arange(center.shape[0])[None, :]).astype(jnp.float32)
    count = onehot.sum(axis=0)
    num = count[labels]
    centers_g = center[labels]
    dist = jnp.sqrt(jnp.sum((coordinate - centers_g) ** 2, axis=1))
    return jnp.sum(dist / num) / coordinate.shape[0]


if __name__ == "__main__":
    class_num = 10   # histc in the PyTorch module hardcodes 10 bins (MNIST)
    feat_num = 32
    batch = 8

    key = jax.random.PRNGKey(0)
    k_coord, k_labels, k_center = jax.random.split(key, 3)

    coordinate = jax.random.normal(k_coord, (batch, feat_num), dtype=jnp.float32)
    labels = jax.random.randint(k_labels, (batch,), 0, class_num, dtype=jnp.int32)
    # nn.Parameter(torch.randn(class_num, feat_num)) -> deterministic normal init
    center = jax.random.normal(k_center, (class_num, feat_num), dtype=jnp.float32)

    # Small-batch fast path (matches the module's MNIST-sized usage).
    loss = jax.block_until_ready(centerloss(coordinate, labels, center))
    loss_ref = jax.block_until_ready(centerloss_ref(coordinate, labels, center))
    assert jnp.allclose(loss, loss_ref, rtol=1e-5, atol=1e-5), (loss, loss_ref)

    # Also exercise the tiled / megacore streaming path (still tiny: ~0.6 MB).
    kc2, kl2 = jax.random.split(jax.random.PRNGKey(1))
    batch_big = 4500
    coord_big = jax.random.normal(kc2, (batch_big, feat_num), dtype=jnp.float32)
    labels_big = jax.random.randint(kl2, (batch_big,), 0, class_num, dtype=jnp.int32)
    loss_big = jax.block_until_ready(centerloss(coord_big, labels_big, center))
    loss_big_ref = jax.block_until_ready(centerloss_ref(coord_big, labels_big, center))
    assert jnp.allclose(loss_big, loss_big_ref, rtol=1e-5, atol=1e-5), (
        loss_big, loss_big_ref)

    print("KERNEL_OK")
</pallas_src>

<mosaic_0001>
module attributes {stable_mosaic.version = 11 : i64} {
  func.func @_centerloss_single_kernel(%arg0: i32, %arg1: memref<32x128xf32, #tpu.memory_space<vmem>>, %arg2: memref<1x128xi32, #tpu.memory_space<vmem>>, %arg3: memref<32x10xf32, #tpu.memory_space<vmem>>, %arg4: memref<1x1xf32, #tpu.memory_space<smem>>) attributes {dimension_semantics = [#tpu.dimension_semantics<arbitrary>], iteration_bounds = array<i64: 1>, scalar_prefetch = 0 : i64, scratch_operands = 0 : i64, tpu.core_type = #tpu.core_type<tc>, window_params = [{pipeline_mode = #tpu.pipeline_mode<synchronous>, transform_indices = @transform_0, window_bounds = array<i64: 32, 128>}, {pipeline_mode = #tpu.pipeline_mode<synchronous>, transform_indices = @transform_1, window_bounds = array<i64: 1, 128>}, {pipeline_mode = #tpu.pipeline_mode<synchronous>, transform_indices = @transform_2, window_bounds = array<i64: 32, 10>}, {transform_indices = @transform_3, window_bounds = array<i64: 1, 1>}]} {
    %c0 = arith.constant 0 : index
    %c0_0 = arith.constant 0 : index
    %0 = vector.load %arg1[%c0, %c0_0] : memref<32x128xf32, #tpu.memory_space<vmem>>, vector<32x128xf32>
    %c0_1 = arith.constant 0 : index
    %c0_2 = arith.constant 0 : index
    %1 = vector.load %arg2[%c0_1, %c0_2] : memref<1x128xi32, #tpu.memory_space<vmem>>, vector<1x128xi32>
    %c0_3 = arith.constant 0 : index
    %c0_4 = arith.constant 0 : index
    %2 = vector.load %arg3[%c0_3, %c0_4] : memref<32x10xf32, #tpu.memory_space<vmem>>, vector<32x10xf32>
    %3 = tpu.iota {dimensions = array<i32: 0>} : vector<10x128xi32>
    %4 = vector.broadcast %1 : vector<1x128xi32> to vector<10x128xi32>
    %5 = arith.cmpi eq, %4, %3 : vector<10x128xi32>
    %6 = arith.extui %5 : vector<10x128xi1> to vector<10x128xi32>
    %7 = arith.sitofp %6 : vector<10x128xi32> to vector<10x128xf32>
    %cst = arith.constant dense<0.000000e+00> : vector<32x128xf32>
    %8 = tpu.matmul %2, %7, %cst {dimension_numbers = #tpu.dot_dimension_numbers<[1], [0], [0], [1], [0, 0, 1, 1], [], []>} : vector<32x10xf32>, vector<10x128xf32>, vector<32x128xf32> -> vector<32x128xf32>
    %9 = arith.subf %0, %8 : vector<32x128xf32>
    %10 = arith.mulf %9, %9 : vector<32x128xf32>
    %cst_5 = arith.constant dense<0.000000e+00> : vector<128xf32>
    %11 = vector.multi_reduction <add>, %10, %cst_5 [0] : vector<32x128xf32> to vector<128xf32>
    %12 = vector.shape_cast %11 : vector<128xf32> to vector<1x128xf32>
    %13 = math.sqrt %12 : vector<1x128xf32>
    %cst_6 = arith.constant dense<0.000000e+00> : vector<10xf32>
    %14 = vector.multi_reduction <add>, %7, %cst_6 [1] : vector<10x128xf32> to vector<10xf32>
    %15 = vector.shape_cast %14 : vector<10xf32> to vector<10x1xf32>
    %16 = vector.broadcast %13 : vector<1x128xf32> to vector<10x128xf32>
    %17 = arith.mulf %7, %16 : vector<10x128xf32>
    %cst_7 = arith.constant dense<0.000000e+00> : vector<10xf32>
    %18 = vector.multi_reduction <add>, %17, %cst_7 [1] : vector<10x128xf32> to vector<10xf32>
    %19 = vector.shape_cast %18 : vector<10xf32> to vector<10x1xf32>
    %cst_8 = arith.constant 0.000000e+00 : f32
    %20 = vector.broadcast %cst_8 : f32 to vector<10x1xf32>
    %21 = arith.cmpf ogt, %15, %20 : vector<10x1xf32>
    %cst_9 = arith.constant 8.000000e+00 : f32
    %22 = vector.broadcast %cst_9 : f32 to vector<10x1xf32>
    %23 = arith.mulf %15, %22 : vector<10x1xf32>
    %cst_10 = arith.constant 1.000000e+00 : f32
    %24 = vector.broadcast %cst_10 : f32 to vector<10x1xf32>
    %25 = arith.select %21, %23, %24 : vector<10x1xi1>, vector<10x1xf32>
    %26 = tpu.reciprocal %25 : vector<10x1xf32> -> vector<10x1xf32>
    %27 = arith.mulf %19, %26 : vector<10x1xf32>
    %cst_11 = arith.constant 0.000000e+00 : f32
    %28 = vector.broadcast %cst_11 : f32 to vector<10x1xf32>
    %29 = arith.select %21, %27, %28 : vector<10x1xi1>, vector<10x1xf32>
    %30 = vector.shape_cast %29 : vector<10x1xf32> to vector<1x10x1xf32>
    %cst_12 = arith.constant dense<0.000000e+00> : vector<1xf32>
    %31 = vector.multi_reduction <add>, %30, %cst_12 [1, 2] : vector<1x10x1xf32> to vector<1xf32>
    %32 = vector.shape_cast %31 : vector<1xf32> to vector<1x1x1xf32>
    %33 = vector.extract %32[0, 0, 0] : f32 from vector<1x1x1xf32>
    %c0_13 = arith.constant 0 : index
    %c0_14 = arith.constant 0 : index
    %34 = memref.load %arg4[%c0_13, %c0_14] : memref<1x1xf32, #tpu.memory_space<smem>>
    memref.store %33, %arg4[%c0_13, %c0_14] : memref<1x1xf32, #tpu.memory_space<smem>>
    return
  }
  func.func @transform_0(%arg0: i32) -> (i32, i32) {
    %c0_i32 = arith.constant 0 : i32
    %c0_i32_0 = arith.constant 0 : i32
    %c0_i32_1 = arith.constant 0 : i32
    return %c0_i32, %c0_i32_0 : i32, i32
  }
  func.func @transform_1(%arg0: i32) -> (i32, i32) {
    %c0_i32 = arith.constant 0 : i32
    %c0_i32_0 = arith.constant 0 : i32
    %c0_i32_1 = arith.constant 0 : i32
    return %c0_i32, %c0_i32_0 : i32, i32
  }
  func.func @transform_2(%arg0: i32) -> (i32, i32) {
    %c0_i32 = arith.constant 0 : i32
    %c0_i32_0 = arith.constant 0 : i32
    %c0_i32_1 = arith.constant 0 : i32
    return %c0_i32, %c0_i32_0 : i32, i32
  }
  func.func @transform_3(%arg0: i32) -> (i32, i32) {
    %c0_i32 = arith.constant 0 : i32
    %c0_i32_0 = arith.constant 0 : i32
    %c0_i32_1 = arith.constant 0 : i32
    return %c0_i32, %c0_i32_0 : i32, i32
  }
}

</mosaic_0001>

<llo_original>
// kernel: _centerloss_impl.1
$region0: #{_centerloss_impl.1}
  #allocation0 [shape = 'u32[]', space=smem, size = 0x4, offset = 0x4, fixed_abs, tag = 'smem constant byte address 0x4 - core index']
  #allocation1 [shape = 'u32[144,128]{1,0:T(1,128)}', space=vmem, size = 0x12000, scoped, tag = 'internal scratch']
  %s0 = inlined_call_operand.vmem [shape: f32[32,128], index: 0, kind: input, shape index: {}]
  %s1 = inlined_call_operand.vmem [shape: s32[1,128], index: 1, kind: input, shape index: {}]
  %s2 = inlined_call_operand.vmem [shape: f32[32,10], index: 2, kind: input, shape index: {}]
  %s3 = inlined_call_operand.hbm [shape: f32[1,1], index: 3, kind: output, shape index: {}]
  %s4 = sld [smem:[#allocation0]]
  $region22: #{_centerloss_impl.1} parent=0
    _
  %s6 = ssub.s32 1, %s4
  %s7 = scalar_select 0, %s6, %s4
  $region1: #{_centerloss_impl.1} parent=0
    #allocation2 [shape = 'u8[512]{0}', space=smem, size = 0x200, scoped, tag = 'output window, operand 0, single buffered']
    #allocation3 [shape = 's32[1]{0}', space=sflag, size = 0x4, scoped, tag = 'scoped memory for _centerloss_impl.1']
    %8 = vsyncpa [#allocation3], 0
    // Predicated region
    $region2: #{_centerloss_impl.1} parent=1 // pred_check
      _
    $region3: #{_centerloss_impl.1} parent=1 // pred_check_branch
      %10 = sbr.rel (0) target = $region5
    $region4: #{_centerloss_impl.1} parent=1 // pred_region
      _
    $region5: #{_centerloss_impl.1} parent=1 // pred_fallthru
      _
    // Predicated region
    $region6: #{_centerloss_impl.1} parent=1 // pred_check
      _
    $region7: #{_centerloss_impl.1} parent=1 // pred_check_branch
      %12 = sbr.rel (0) target = $region9
    $region8: #{_centerloss_impl.1} parent=1 // pred_region
      _
    $region9: #{_centerloss_impl.1} parent=1 // pred_fallthru
      _
    // Predicated region
    $region10: #{_centerloss_impl.1} parent=1 // pred_check
      _
    $region11: #{_centerloss_impl.1} parent=1 // pred_check_branch
      %14 = sbr.rel (0) target = $region13
    $region12: #{_centerloss_impl.1} parent=1 // pred_region
      _
    $region13: #{_centerloss_impl.1} parent=1 // pred_fallthru
      _
    %v15 = vld [vmem:[%s0] sm:$0xff]
    %v16 = vld [vmem:[%s0 + $0x8] sm:$0xff]
    %v17 = vld [vmem:[%s0 + $0x10] sm:$0xff]
    %v18 = vld [vmem:[%s0 + $0x18] sm:$0xff]
    %v19 = vld [vmem:[%s1] sm:$0x1]
    %v20 = vld [vmem:[%s2] sm:$0xff]
    %v21 = vld [vmem:[%s2 + $0x8] sm:$0xff]
    %v22 = vld [vmem:[%s2 + $0x10] sm:$0xff]
    %v23 = vld [vmem:[%s2 + $0x18] sm:$0xff]
    %v24 = vlaneseq
    %v25 = vshrl.u32 %v24, 7
    %v26 = vadd.s32 %v25, 8
    %v27 = vlaneseq
    %v28 = vshrl.u32 %v27, 7
    %v29 = vsub.s32 0, %v28
    %v30 = vrot.slane %v19, %v29
    %vm31 = vcmp.eq.s32.totalorder %v30, %v25
    %vm32 = vcmp.eq.s32.totalorder %v30, %v26
    %v33 = vsel %vm31, 1, 0
    %v34 = vsel %vm32, 1, 0
    %v35 = vcvt.s32.f32 %v33
    %v36 = vcvt.s32.f32 %v34
    %vm37 = vcmask 80896
    %v39 = vsel %vm37, %v20, 0
    %v42 = vsel %vm37, %v21, 0
    %v45 = vsel %vm37, %v22, 0
    %v48 = vsel %vm37, %v23, 0
    %vm50 = vcmask 1041408
    %v52 = vsel %vm50, %v36, 0
    %54 = vmatprep.subr.mxu0 0.0
    %55 = vmatpush1.msra.mxu0 %v35
    %56 = vmatprep.subr.mxu0 0.0
    %57 = vmatpush1.msra.mxu0 %v52
    %58 = vmatprep.subr.mxu0 0.0
    %59 = vmatpush1.msra.mxu0 0.0
    %60 = vmatprep.subr.mxu0 0.0
    %61 = vmatpush1.msra.mxu0 0.0
    %62 = vmatprep.subr.mxu0 0.0
    %63 = vmatpush1.msra.mxu0 0.0
    %64 = vmatprep.subr.mxu0 0.0
    %65 = vmatpush1.msra.mxu0 0.0
    %66 = vmatprep.subr.mxu0 0.0
    %67 = vmatpush1.msra.mxu0 0.0
    %68 = vmatprep.subr.mxu0 0.0
    %69 = vmatpush1.msra.mxu0 0.0
    %70 = vmatprep.subr.mxu0 0.0
    %71 = vmatpush1.msra.mxu0 0.0
    %72 = vmatprep.subr.mxu0 0.0
    %73 = vmatpush1.msra.mxu0 0.0
    %74 = vmatprep.subr.mxu0 0.0
    %75 = vmatpush1.msra.mxu0 0.0
    %76 = vmatprep.subr.mxu0 0.0
    %77 = vmatpush1.msra.mxu0 0.0
    %78 = vmatprep.subr.mxu0 0.0
    %79 = vmatpush1.msra.mxu0 0.0
    %80 = vmatprep.subr.mxu0 0.0
    %81 = vmatpush1.msra.mxu0 0.0
    %82 = vmatprep.subr.mxu0 0.0
    %83 = vmatpush1.msra.mxu0 0.0
    %84 = vmatprep.subr.mxu0 0.0
    %85 = vmatpush1.msra.mxu0 0.0
    %86 = vmatprep.subr.mxu0 0.0
    %87 = vmatpush1.msra.mxu0 0.0
    %88 = vmatprep.subr.mxu0 0.0
    %89 = vmatpush1.msra.mxu0 0.0
    %90 = vmatprep.subr.mxu0 0.0
    %91 = vmatpush1.msra.mxu0 0.0
    %92 = vmatprep.subr.mxu0 0.0
    %93 = vmatpush1.msra.mxu0 0.0
    %94 = vmatprep.subr.mxu0 0.0
    %95 = vmatpush1.msra.mxu0 0.0
    %96 = vmatprep.subr.mxu0 0.0
    %97 = vmatpush1.msra.mxu0 0.0
    %98 = vmatprep.subr.mxu0 0.0
    %99 = vmatpush1.msra.mxu0 0.0
    %100 = vmatprep.subr.mxu0 0.0
    %101 = vmatpush1.msra.mxu0 0.0
    %102 = vmatprep.subr.mxu0 0.0
    %103 = vmatpush1.msra.mxu0 0.0
    %104 = vmatprep.subr.mxu0 0.0
    %105 = vmatpush1.msra.mxu0 0.0
    %106 = vmatprep.subr.mxu0 0.0
    %107 = vmatpush1.msra.mxu0 0.0
    %108 = vmatprep.subr.mxu0 0.0
    %109 = vmatpush1.msra.mxu0 0.0
    %110 = vmatprep.subr.mxu0 0.0
    %111 = vmatpush1.msra.mxu0 0.0
    %112 = vmatprep.subr.mxu0 0.0
    %113 = vmatpush1.msra.mxu0 0.0
    %114 = vmatprep.subr.mxu0 0.0
    %115 = vmatpush1.msra.mxu0 0.0
    %116 = vmatprep.subr.mxu0 0.0
    %117 = vmatpush1.msra.mxu0 0.0
    %118 = vmatprep.mubr.f32.mxu0 0.0
    %119 = vmatmul.mubr.f32.gmra.mrb[0].mxu0 %v39
    %v120 = vpop.f32.mrb[0].mxu0
    %v121 = vadd.f32 0.0, %v120
    %v122 = vpop.f32.mrb[0].mxu0
    %123 = vmatprep.mubr.f32.mxu0 0.0
    %124 = vmatmul.mubr.f32.gmra.mrb[0].mxu0 %v42
    %v125 = vpop.f32.mrb[0].mxu0
    %v126 = vadd.f32 0.0, %v125
    %v127 = vpop.f32.mrb[0].mxu0
    %128 = vmatprep.mubr.f32.mxu0 0.0
    %129 = vmatmul.mubr.f32.gmra.mrb[0].mxu0 %v45
    %v130 = vpop.f32.mrb[0].mxu0
    %v131 = vadd.f32 0.0, %v130
    %v132 = vpop.f32.mrb[0].mxu0
    %133 = vmatprep.mubr.f32.mxu0 0.0
    %134 = vmatmul.mubr.f32.gmra.mrb[0].mxu0 %v48
    %v135 = vpop.f32.mrb[0].mxu0
    %v136 = vadd.f32 0.0, %v135
    %v137 = vpop.f32.mrb[0].mxu0
    %138 = vdwg.mxu0
    %v139 = vsub.f32 %v15, %v121
    %v140 = vsub.f32 %v16, %v126
    %v141 = vsub.f32 %v17, %v131
    %v142 = vsub.f32 %v18, %v136
    %v143 = vmul.f32 %v139, %v139
    %v144 = vmul.f32 %v140, %v140
    %v145 = vmul.f32 %v141, %v141
    %v146 = vmul.f32 %v142, %v142
    %v147 = vadd.f32 %v143, %v144
    %v148 = vadd.f32 %v147, %v145
    %v149 = vadd.f32 %v148, %v146
    %v150 = vrot.slane %v149, 4
    %v151 = vadd.f32 %v149, %v150
    %v152 = vrot.slane %v151, 2
    %v153 = vadd.f32 %v151, %v152
    %v154 = vrot.slane %v153, 1
    %v155 = vadd.f32 %v153, %v154
    %v156 = vrsqrt.pop %v155
    %v157 = vmul.f32 %v155, %v156
    %vm158 = vcmp.eq.f32.partialorder %v155, inf
    %v159 = vsel %vm158, %v155, %v157
    %vm160 = vcmp.eq.f32.partialorder %v155, 0.0
    %v161 = vand.u32 %v155, 2147483648
    %v162 = vsel %vm160, %v161, %v159
    %163 = vadd.xlane.f32.xlu0 %v35
    %v164 = vpop.xlane.xlu0 %163
    %v165 = vsel %vm50, %v36, 0.0
    %166 = vadd.xlane.f32.xlu0 %v165
    %v167 = vpop.xlane.xlu0 %166
    %v168 = vmul.f32 %v35, %v162
    %v169 = vmul.f32 %v36, %v162
    %170 = vadd.xlane.f32.xlu0 %v168
    %v171 = vpop.xlane.xlu0 %170
    %v172 = vsel %vm50, %v169, 0.0
    %173 = vadd.xlane.f32.xlu0 %v172
    %v174 = vpop.xlane.xlu0 %173
    %vm175 = vcmp.gt.f32.partialorder %v164, 0.0
    %vm176 = vcmp.gt.f32.partialorder %v167, 0.0
    %v177 = vmul.f32 %v164, 8.0
    %v178 = vmul.f32 %v167, 8.0
    %v179 = vsel %vm175, %v177, 1.0
    %v180 = vsel %vm176, %v178, 1.0
    %v181 = vrcp.pop %v179
    %v182 = vrcp.pop %v180
    %v183 = vmul.f32 %v171, %v181
    %v184 = vmul.f32 %v174, %v182
    %v185 = vsel %vm175, %v183, 0.0
    %v186 = vsel %vm176, %v184, 0.0
    %vm187 = vcmask 7168
    %v188 = vsel %vm187, %v185, 0.0
    %vm189 = vcmask 1024
    %v190 = vsel %vm189, %v186, 0.0
    %v191 = vadd.f32 %v188, %v190
    %192 = vadd.xlane.f32.xlu0 %v191
    %v193 = vpop.xlane.xlu0 %192
    %v194 = vrot.slane %v193, 4
    %v195 = vadd.f32 %v193, %v194
    %v196 = vrot.slane %v195, 2
    %v197 = vadd.f32 %v195, %v196
    %v198 = vrot.slane %v197, 1
    %v199 = vadd.f32 %v197, %v198
    %s200 = vtos %v199
    %s201 = scalar_lea.smem [#allocation2], 0
    %202 = sst [smem:[%s201]] %s200
    // Predicated region
    $region14: #{_centerloss_impl.1} parent=1 // pred_check
      _
    $region15: #{_centerloss_impl.1} parent=1 // pred_check_branch
      %204 = sbr.rel (0) target = $region17
    $region16: #{_centerloss_impl.1} parent=1 // pred_region
      %s206 = ssub.s32 16, 16
      %207 = vsyncadd [#allocation3], %s206
      %210 = dma.smem_to_hbm [#allocation2], 16, %s3, [#allocation3]
    $region17: #{_centerloss_impl.1} parent=1 // pred_fallthru
      _
    // Predicated region
    $region18: #{_centerloss_impl.1} parent=1 // pred_check
      _
    $region19: #{_centerloss_impl.1} parent=1 // pred_check_branch
      %212 = sbr.rel (0) target = $region21
    $region20: #{_centerloss_impl.1} parent=1 // pred_region
      %213 = dma.done [#allocation3], 16
    $region21: #{_centerloss_impl.1} parent=1 // pred_fallthru
      _
    %214 = sfence
    %215 = vsyncpa [#allocation3], 1

</llo_original>
